<compile_context>
chip_gen: v7x
topology: tpu7x:2x2x1
jax: 0.10.0
libtpu: 0.0.40
codegen_flags: <defaults>
</compile_context>

<pallas_src>
import math
import functools

import jax
import jax.numpy as jnp
from jax.experimental import pallas as pl
from jax.experimental.pallas import tpu as pltpu

_GELU_C1 = math.sqrt(2.0 / math.pi)
_GELU_C2 = _GELU_C1 * 0.044715


def _new_gelu(x):
    # 0.5 * x * (1 + tanh(sqrt(2/pi) * (x + 0.044715 * x^3)))  -- with folded constants:
    #   inner = x * (C1 + C2 * x^2),  out = (0.5*x) * (1 + tanh(inner))
    u = x * x
    inner = x * (_GELU_C1 + _GELU_C2 * u)
    return (0.5 * x) * (1.0 + jnp.tanh(inner))


# -------------------- Path A: weights VMEM-resident, grid over M only --------------------
def _mlp_resident_kernel(x_ref, wfc_ref, bfc_ref, wproj_ref, bproj_ref, o_ref,
                         *, th, gelu_dtype):
    # x_ref: [tm, E]; wfc_ref: [E, H]; bfc_ref: [1, H]; wproj_ref: [H, E]; bproj_ref: [1, E]
    H = wfc_ref.shape[1]
    n_chunks = H // th
    x = x_ref[...]
    # Fold c_proj bias into the accumulator init.
    acc = jnp.broadcast_to(bproj_ref[...].astype(jnp.float32), o_ref.shape)
    for c in range(n_chunks):           # static unroll; caps live intermediate at [tm, th]
        lo = c * th
        h = jnp.dot(x, wfc_ref[:, lo:lo + th], preferred_element_type=jnp.float32)
        h = h + bfc_ref[:, lo:lo + th].astype(jnp.float32)
        h = _new_gelu(h.astype(gelu_dtype))
        acc = acc + jnp.dot(h.astype(wproj_ref.dtype), wproj_ref[lo:lo + th, :],
                            preferred_element_type=jnp.float32)
    # dropout is identity in eval / p == 0
    o_ref[...] = acc.astype(o_ref.dtype)


# -------------------- Path B: H-chunked fallback (weights don't fit VMEM) --------------------
def _mlp_chunked_kernel(x_ref, wfc_ref, bfc_ref, wproj_ref, bproj_ref, o_ref, acc_ref,
                        *, gelu_dtype):
    # x_ref: [tm, E]; wfc_ref: [E, th]; bfc_ref: [1, th]; wproj_ref: [th, E]; bproj_ref: [1, E]
    # acc_ref: [tm, E] f32 scratch, persists across the H-chunk (innermost) grid axis.
    k = pl.program_id(1)

    @pl.when(k == 0)
    def _init():
        acc_ref[...] = jnp.broadcast_to(
            bproj_ref[...].astype(jnp.float32), acc_ref.shape)

    h = jnp.dot(x_ref[...], wfc_ref[...], preferred_element_type=jnp.float32)
    h = h + bfc_ref[...].astype(jnp.float32)
    h = _new_gelu(h.astype(gelu_dtype))
    acc_ref[...] += jnp.dot(h.astype(wproj_ref.dtype), wproj_ref[...],
                            preferred_element_type=jnp.float32)

    @pl.when(k == pl.num_programs(1) - 1)
    def _finalize():
        # dropout is identity in eval / p == 0
        o_ref[...] = acc_ref[...].astype(o_ref.dtype)


# -------------------- wrapper helpers --------------------
def _round_up(x, m):
    return ((x + m - 1) // m) * m


def _device_kind():
    try:
        return jax.devices()[0].device_kind.lower()
    except Exception:
        return ""


def _m_tile_cap(kind):
    # v6e: highest compute/BW ratio -> needs tm ~1024 to hit the MXU roofline.
    if "v6" in kind:
        return 1024
    # v5e (~240 flops/B crossover) and v7x (~310 per TC) -> 512. Unknown: 512.
    return 512


def _vmem_limit(kind):
    # v5e / v6e have 128 MiB physical VMEM; v7x only 64 MiB -> stay conservative.
    if "v5" in kind or "v6" in kind:
        return 100 * 1024 * 1024
    return 48 * 1024 * 1024


def _pick_m_tile(M, kind):
    tm = min(_m_tile_cap(kind), _round_up(M, 8))
    # v7x has 2 TensorCores: the "parallel" M axis needs >= 2 tiles or one TC idles.
    if "v7" in kind and M > 256 and pl.cdiv(M, tm) < 2:
        tm = max(256, _round_up(pl.cdiv(M, 2), 256))
    return tm


def _pick_h_chunk(H, max_chunk):
    """Largest 128-aligned chunk <= max_chunk that divides H (fallback: H)."""
    if H <= max_chunk:
        return H
    for th in (max_chunk, 1024, 768, 512, 384, 256, 128):
        if th <= max_chunk and H % th == 0:
            return th
    return H


def _fits_resident(E, H, tm, itemsize, vmem_limit):
    wb = 2 * 2 * E * H * itemsize          # w_fc + w_proj, 2x for pipeline buffers
    bb = 2 * (H + E) * itemsize            # biases
    ab = 2 * 2 * tm * E * itemsize         # x + out tiles, double-buffered
    ib = 3 * tm * min(H, 512) * 4          # live f32 intermediates headroom
    acc = tm * E * 4
    return (wb + bb + ab + ib + acc) <= int(0.85 * vmem_limit)


@functools.partial(jax.jit, static_argnames=("compute_dtype", "force_chunked"))
def mlp_forward(x, w_fc, b_fc, w_proj, b_proj, *, compute_dtype=None, force_chunked=False):
    """x: [B, T, E] -> [B, T, E]  (GPT-2 MLP forward; dropout in eval mode)."""
    B, T, E = x.shape
    H = w_fc.shape[1]                       # 4 * E
    out_dtype = x.dtype
    kind = _device_kind()

    x2d = x.reshape(B * T, E)
    if compute_dtype is not None:
        # Full-rate MXU feed: bf16 operands (f32 accumulation stays inside the kernel).
        x2d = x2d.astype(compute_dtype)
        w_fc = w_fc.astype(compute_dtype)
        b_fc = b_fc.astype(compute_dtype)
        w_proj = w_proj.astype(compute_dtype)
        b_proj = b_proj.astype(compute_dtype)

    M = B * T
    tm = _pick_m_tile(M, kind)
    M_pad = _round_up(M, tm)
    if M_pad != M:
        # Zero-pad so padded rows flow through gelu with finite values.
        x2d = jnp.pad(x2d, ((0, M_pad - M), (0, 0)))

    wdtype = jnp.dtype(w_proj.dtype)
    # bf16 gelu only where the VPU has a bf16 path (v6e / v7x); v5e keeps f32 gelu.
    if wdtype == jnp.dtype(jnp.bfloat16) and "v5" not in kind:
        gelu_dtype = jnp.bfloat16
    else:
        gelu_dtype = jnp.float32

    vmem_limit = _vmem_limit(kind)
    use_resident = (not force_chunked) and _fits_resident(
        E, H, tm, wdtype.itemsize, vmem_limit)

    if use_resident:
        # Weights are read from HBM exactly once per call and stay VMEM-resident.
        th = _pick_h_chunk(H, max_chunk=512)
        kernel = functools.partial(_mlp_resident_kernel, th=th, gelu_dtype=gelu_dtype)
        out = pl.pallas_call(
            kernel,
            out_shape=jax.ShapeDtypeStruct((M_pad, E), out_dtype),
            grid=(M_pad // tm,),
            in_specs=[
                pl.BlockSpec((tm, E), lambda i: (i, 0)),   # x       (tiled over M)
                pl.BlockSpec((E, H), lambda i: (0, 0)),    # w_fc    (resident)
                pl.BlockSpec((1, H), lambda i: (0, 0)),    # b_fc    (resident)
                pl.BlockSpec((H, E), lambda i: (0, 0)),    # w_proj  (resident)
                pl.BlockSpec((1, E), lambda i: (0, 0)),    # b_proj  (resident)
            ],
            out_specs=pl.BlockSpec((tm, E), lambda i: (i, 0)),
            compiler_params=pltpu.CompilerParams(
                dimension_semantics=("parallel",),
                vmem_limit_bytes=vmem_limit,
            ),
        )(x2d, w_fc, b_fc, w_proj, b_proj)
    else:
        # Fallback for shapes whose weights don't fit VMEM: stream H chunks.
        th = _pick_h_chunk(H, max_chunk=1024)
        kernel = functools.partial(_mlp_chunked_kernel, gelu_dtype=gelu_dtype)
        out = pl.pallas_call(
            kernel,
            out_shape=jax.ShapeDtypeStruct((M_pad, E), out_dtype),
            grid=(M_pad // tm, H // th),
            in_specs=[
                pl.BlockSpec((tm, E), lambda i, k: (i, 0)),   # x
                pl.BlockSpec((E, th), lambda i, k: (0, k)),   # w_fc chunk
                pl.BlockSpec((1, th), lambda i, k: (0, k)),   # b_fc chunk
                pl.BlockSpec((th, E), lambda i, k: (k, 0)),   # w_proj chunk
                pl.BlockSpec((1, E),  lambda i, k: (0, 0)),   # b_proj (resident)
            ],
            out_specs=pl.BlockSpec((tm, E), lambda i, k: (i, 0)),
            scratch_shapes=[pltpu.VMEM((tm, E), jnp.float32)],
            compiler_params=pltpu.CompilerParams(
                dimension_semantics=("parallel", "arbitrary"),
                vmem_limit_bytes=vmem_limit,
            ),
        )(x2d, w_fc, b_fc, w_proj, b_proj)

    if M_pad != M:
        out = out[:M]
    return out.reshape(B, T, E)


def init_params(key, n_embd, dtype=jnp.float32):
    """Deterministic init mirroring nn.Linear shapes (stored pre-transposed)."""
    k1, k2, k3, k4 = jax.random.split(key, 4)
    h = 4 * n_embd
    # nn.Linear default: U(-1/sqrt(fan_in), 1/sqrt(fan_in))
    lim_fc = 1.0 / math.sqrt(n_embd)
    lim_pr = 1.0 / math.sqrt(h)
    w_fc = jax.random.uniform(k1, (n_embd, h), dtype, -lim_fc, lim_fc)
    b_fc = jax.random.uniform(k2, (1, h), dtype, -lim_fc, lim_fc)
    w_proj = jax.random.uniform(k3, (h, n_embd), dtype, -lim_pr, lim_pr)
    b_proj = jax.random.uniform(k4, (1, n_embd), dtype, -lim_pr, lim_pr)
    return w_fc, b_fc, w_proj, b_proj


if __name__ == "__main__":
    key = jax.random.PRNGKey(0)
    kx, kp = jax.random.split(key)

    B, T, E = 2, 8, 32  # batch=2, seq=8, n_embd=32 (hidden H = 128)
    x = jax.random.normal(kx, (B, T, E), dtype=jnp.float32)
    w_fc, b_fc, w_proj, b_proj = init_params(kp, E)

    # Plain-JAX reference (torch-exact new_gelu formula).
    h_ref = x.reshape(-1, E) @ w_fc + b_fc
    h_ref = 0.5 * h_ref * (1.0 + jnp.tanh(
        math.sqrt(2.0 / math.pi) * (h_ref + 0.044715 * h_ref ** 3)))
    y_ref = (h_ref @ w_proj + b_proj).reshape(B, T, E)

    # 1) f32, weight-resident path (default).
    y = jax.block_until_ready(mlp_forward(x, w_fc, b_fc, w_proj, b_proj))
    assert jnp.allclose(y, y_ref, atol=1e-4, rtol=1e-4), "f32 resident path mismatch"

    # 2) f32, forced H-chunked fallback path (the big-model code path).
    y_c = jax.block_until_ready(
        mlp_forward(x, w_fc, b_fc, w_proj, b_proj, force_chunked=True))
    assert jnp.allclose(y_c, y_ref, atol=1e-4, rtol=1e-4), "f32 chunked path mismatch"

    # 3) bf16 compute path (full-rate MXU feed), looser tolerance vs f32 reference.
    y_bf = jax.block_until_ready(
        mlp_forward(x, w_fc, b_fc, w_proj, b_proj, compute_dtype=jnp.bfloat16))
    assert jnp.allclose(y_bf, y_ref, atol=5e-2, rtol=5e-2), "bf16 path mismatch"

    print("KERNEL_OK")
</pallas_src>

<mosaic_0001>
module attributes {stable_mosaic.version = 11 : i64} {
  func.func @_mlp_resident_kernel(%arg0: i32, %arg1: memref<16x32xf32, #tpu.memory_space<vmem>>, %arg2: memref<32x128xf32, #tpu.memory_space<vmem>>, %arg3: memref<1x128xf32, #tpu.memory_space<vmem>>, %arg4: memref<128x32xf32, #tpu.memory_space<vmem>>, %arg5: memref<1x32xf32, #tpu.memory_space<vmem>>, %arg6: memref<16x32xf32, #tpu.memory_space<vmem>>) attributes {dimension_semantics = [#tpu.dimension_semantics<parallel>], iteration_bounds = array<i64: 1>, scalar_prefetch = 0 : i64, scratch_operands = 0 : i64, tpu.core_type = #tpu.core_type<tc>, window_params = [{transform_indices = @transform_0, window_bounds = array<i64: 16, 32>}, {pipeline_mode = #tpu.pipeline_mode<synchronous>, transform_indices = @transform_1, window_bounds = array<i64: 32, 128>}, {pipeline_mode = #tpu.pipeline_mode<synchronous>, transform_indices = @transform_2, window_bounds = array<i64: 1, 128>}, {pipeline_mode = #tpu.pipeline_mode<synchronous>, transform_indices = @transform_3, window_bounds = array<i64: 128, 32>}, {pipeline_mode = #tpu.pipeline_mode<synchronous>, transform_indices = @transform_4, window_bounds = array<i64: 1, 32>}, {transform_indices = @transform_5, window_bounds = array<i64: 16, 32>}]} {
    %c0 = arith.constant 0 : index
    %c0_0 = arith.constant 0 : index
    %0 = vector.load %arg1[%c0, %c0_0] : memref<16x32xf32, #tpu.memory_space<vmem>>, vector<16x32xf32>
    %c0_1 = arith.constant 0 : index
    %c0_2 = arith.constant 0 : index
    %1 = vector.load %arg5[%c0_1, %c0_2] : memref<1x32xf32, #tpu.memory_space<vmem>>, vector<1x32xf32>
    %2 = vector.shape_cast %1 : vector<1x32xf32> to vector<1x32xf32>
    %3 = vector.broadcast %2 : vector<1x32xf32> to vector<16x32xf32>
    %c0_3 = arith.constant 0 : index
    %c0_4 = arith.constant 0 : index
    %4 = vector.load %arg2[%c0_3, %c0_4] : memref<32x128xf32, #tpu.memory_space<vmem>>, vector<32x128xf32>
    %cst = arith.constant dense<0.000000e+00> : vector<16x128xf32>
    %5 = tpu.matmul %0, %4, %cst {dimension_numbers = #tpu.dot_dimension_numbers<[1], [0], [0], [1], [0, 0, 1, 1], [], []>} : vector<16x32xf32>, vector<32x128xf32>, vector<16x128xf32> -> vector<16x128xf32>
    %c0_5 = arith.constant 0 : index
    %c0_6 = arith.constant 0 : index
    %6 = vector.load %arg3[%c0_5, %c0_6] : memref<1x128xf32, #tpu.memory_space<vmem>>, vector<1x128xf32>
    %7 = vector.broadcast %6 : vector<1x128xf32> to vector<16x128xf32>
    %8 = arith.addf %5, %7 : vector<16x128xf32>
    %9 = arith.mulf %8, %8 : vector<16x128xf32>
    %cst_7 = arith.constant 0.0356774069 : f32
    %10 = vector.broadcast %cst_7 : f32 to vector<16x128xf32>
    %11 = arith.mulf %10, %9 : vector<16x128xf32>
    %cst_8 = arith.constant 0.797884583 : f32
    %12 = vector.broadcast %cst_8 : f32 to vector<16x128xf32>
    %13 = arith.addf %12, %11 : vector<16x128xf32>
    %14 = arith.mulf %8, %13 : vector<16x128xf32>
    %cst_9 = arith.constant 5.000000e-01 : f32
    %15 = vector.broadcast %cst_9 : f32 to vector<16x128xf32>
    %16 = arith.mulf %15, %8 : vector<16x128xf32>
    %17 = math.tanh %14 : vector<16x128xf32>
    %cst_10 = arith.constant 1.000000e+00 : f32
    %18 = vector.broadcast %cst_10 : f32 to vector<16x128xf32>
    %19 = arith.addf %18, %17 : vector<16x128xf32>
    %20 = arith.mulf %16, %19 : vector<16x128xf32>
    %c0_11 = arith.constant 0 : index
    %c0_12 = arith.constant 0 : index
    %21 = vector.load %arg4[%c0_11, %c0_12] : memref<128x32xf32, #tpu.memory_space<vmem>>, vector<128x32xf32>
    %cst_13 = arith.constant dense<0.000000e+00> : vector<16x32xf32>
    %22 = tpu.matmul %20, %21, %cst_13 {dimension_numbers = #tpu.dot_dimension_numbers<[1], [0], [0], [1], [0, 0, 1, 1], [], []>} : vector<16x128xf32>, vector<128x32xf32>, vector<16x32xf32> -> vector<16x32xf32>
    %23 = arith.addf %3, %22 : vector<16x32xf32>
    %c0_14 = arith.constant 0 : index
    %c0_15 = arith.constant 0 : index
    %24 = vector.load %arg6[%c0_14, %c0_15] : memref<16x32xf32, #tpu.memory_space<vmem>>, vector<16x32xf32>
    tpu.vector_store %arg6[%c0_14, %c0_15], %23 {strides = array<i32>} : memref<16x32xf32, #tpu.memory_space<vmem>>, vector<16x32xf32>,
    return
  }
  func.func @transform_0(%arg0: i32) -> (i32, i32) {
    %c0_i32 = arith.constant 0 : i32
    %c0_i32_0 = arith.constant 0 : i32
    return %arg0, %c0_i32 : i32, i32
  }
  func.func @transform_1(%arg0: i32) -> (i32, i32) {
    %c0_i32 = arith.constant 0 : i32
    %c0_i32_0 = arith.constant 0 : i32
    %c0_i32_1 = arith.constant 0 : i32
    return %c0_i32, %c0_i32_0 : i32, i32
  }
  func.func @transform_2(%arg0: i32) -> (i32, i32) {
    %c0_i32 = arith.constant 0 : i32
    %c0_i32_0 = arith.constant 0 : i32
    %c0_i32_1 = arith.constant 0 : i32
    return %c0_i32, %c0_i32_0 : i32, i32
  }
  func.func @transform_3(%arg0: i32) -> (i32, i32) {
    %c0_i32 = arith.constant 0 : i32
    %c0_i32_0 = arith.constant 0 : i32
    %c0_i32_1 = arith.constant 0 : i32
    return %c0_i32, %c0_i32_0 : i32, i32
  }
  func.func @transform_4(%arg0: i32) -> (i32, i32) {
    %c0_i32 = arith.constant 0 : i32
    %c0_i32_0 = arith.constant 0 : i32
    %c0_i32_1 = arith.constant 0 : i32
    return %c0_i32, %c0_i32_0 : i32, i32
  }
  func.func @transform_5(%arg0: i32) -> (i32, i32) {
    %c0_i32 = arith.constant 0 : i32
    %c0_i32_0 = arith.constant 0 : i32
    return %arg0, %c0_i32 : i32, i32
  }
}

</mosaic_0001>

<llo_original>
// kernel: mlp_forward.1
$region0: #{mlp_forward.1}
  #allocation0 [shape = 'u32[]', space=smem, size = 0x4, offset = 0x4, fixed_abs, tag = 'smem constant byte address 0x4 - core index']
  #allocation1 [shape = 'u32[144,128]{1,0:T(1,128)}', space=vmem, size = 0x12000, scoped, tag = 'internal scratch']
  %s0 = inlined_call_operand.vmem [shape: f32[16,32], index: 0, kind: input, shape index: {}]
  %s1 = inlined_call_operand.vmem [shape: f32[32,128], index: 1, kind: input, shape index: {}]
  %s2 = inlined_call_operand.vmem [shape: f32[1,128], index: 2, kind: input, shape index: {}]
  %s3 = inlined_call_operand.vmem [shape: f32[128,32], index: 3, kind: input, shape index: {}]
  %s4 = inlined_call_operand.vmem [shape: f32[1,32], index: 4, kind: input, shape index: {}]
  %s5 = inlined_call_operand.hbm [shape: f32[16,32], index: 5, kind: output, shape index: {}]
  %s6 = sld [smem:[#allocation0]]
  $region30: #{mlp_forward.1} parent=0
    _
  %s8 = ssub.s32 1, %s6
  %s9 = scalar_select 0, %s8, %s6
  $region1: #{mlp_forward.1} parent=0
    #allocation2 [shape = 'u8[8192]{0}', space=vmem, size = 0x2000, scoped, tag = 'output window, operand 0, single buffered']
    #allocation3 [shape = 's32[1]{0}', space=sflag, size = 0x4, scoped, tag = 'scoped memory for mlp_forward.1']
    %10 = vsyncpa [#allocation3], 0
    // Predicated region
    $region2: #{mlp_forward.1} parent=1 // pred_check
      _
    $region3: #{mlp_forward.1} parent=1 // pred_check_branch
      %12 = sbr.rel (0) target = $region5
    $region4: #{mlp_forward.1} parent=1 // pred_region
      _
    $region5: #{mlp_forward.1} parent=1 // pred_fallthru
      _
    // Predicated region
    $region6: #{mlp_forward.1} parent=1 // pred_check
      _
    $region7: #{mlp_forward.1} parent=1 // pred_check_branch
      %14 = sbr.rel (0) target = $region9
    $region8: #{mlp_forward.1} parent=1 // pred_region
      _
    $region9: #{mlp_forward.1} parent=1 // pred_fallthru
      _
    // Predicated region
    $region10: #{mlp_forward.1} parent=1 // pred_check
      _
    $region11: #{mlp_forward.1} parent=1 // pred_check_branch
      %16 = sbr.rel (0) target = $region13
    $region12: #{mlp_forward.1} parent=1 // pred_region
      _
    $region13: #{mlp_forward.1} parent=1 // pred_fallthru
      _
    // Predicated region
    $region14: #{mlp_forward.1} parent=1 // pred_check
      _
    $region15: #{mlp_forward.1} parent=1 // pred_check_branch
      %18 = sbr.rel (0) target = $region17
    $region16: #{mlp_forward.1} parent=1 // pred_region
      _
    $region17: #{mlp_forward.1} parent=1 // pred_fallthru
      _
    // Predicated region
    $region18: #{mlp_forward.1} parent=1 // pred_check
      _
    $region19: #{mlp_forward.1} parent=1 // pred_check_branch
      %20 = sbr.rel (0) target = $region21
    $region20: #{mlp_forward.1} parent=1 // pred_region
      _
    $region21: #{mlp_forward.1} parent=1 // pred_fallthru
      _
    %v21 = vld [vmem:[%s0] sm:$0xff]
    %v22 = vld [vmem:[%s0 + $0x8] sm:$0xff]
    %v23 = vld [vmem:[%s4] sm:$0x1]
    %v25 = vlaneseq
    %v26 = vshrl.u32 %v25, 7
    %v27 = vsub.s32 0, %v26
    %v28 = vrot.slane %v23, %v27
    %v30 = vld [vmem:[%s1] sm:$0xff]
    %v31 = vld [vmem:[%s1 + $0x8] sm:$0xff]
    %v32 = vld [vmem:[%s1 + $0x10] sm:$0xff]
    %v33 = vld [vmem:[%s1 + $0x18] sm:$0xff]
    %v34 = vld [vmem:[%s2] sm:$0x1]
    %v36 = vlaneseq
    %v37 = vshrl.u32 %v36, 7
    %v38 = vsub.s32 0, %v37
    %v39 = vrot.slane %v34, %v38
    %vm41 = vcmask 261120
    %v43 = vsel %vm41, %v21, 0
    %v46 = vsel %vm41, %v22, 0
    %48 = vmatprep.subr.mxu0 0.0
    %49 = vmatpush1.msra.mxu0 %v30
    %50 = vmatprep.subr.mxu0 0.0
    %51 = vmatpush1.msra.mxu0 %v31
    %52 = vmatprep.subr.mxu0 0.0
    %53 = vmatpush1.msra.mxu0 %v32
    %54 = vmatprep.subr.mxu0 0.0
    %55 = vmatpush1.msra.mxu0 %v33
    %56 = vmatprep.subr.mxu0 0.0
    %57 = vmatpush1.msra.mxu0 0.0
    %58 = vmatprep.subr.mxu0 0.0
    %59 = vmatpush1.msra.mxu0 0.0
    %60 = vmatprep.subr.mxu0 0.0
    %61 = vmatpush1.msra.mxu0 0.0
    %62 = vmatprep.subr.mxu0 0.0
    %63 = vmatpush1.msra.mxu0 0.0
    %64 = vmatprep.subr.mxu0 0.0
    %65 = vmatpush1.msra.mxu0 0.0
    %66 = vmatprep.subr.mxu0 0.0
    %67 = vmatpush1.msra.mxu0 0.0
    %68 = vmatprep.subr.mxu0 0.0
    %69 = vmatpush1.msra.mxu0 0.0
    %70 = vmatprep.subr.mxu0 0.0
    %71 = vmatpush1.msra.mxu0 0.0
    %72 = vmatprep.subr.mxu0 0.0
    %73 = vmatpush1.msra.mxu0 0.0
    %74 = vmatprep.subr.mxu0 0.0
    %75 = vmatpush1.msra.mxu0 0.0
    %76 = vmatprep.subr.mxu0 0.0
    %77 = vmatpush1.msra.mxu0 0.0
    %78 = vmatprep.subr.mxu0 0.0
    %79 = vmatpush1.msra.mxu0 0.0
    %80 = vmatprep.subr.mxu0 0.0
    %81 = vmatpush1.msra.mxu0 0.0
    %82 = vmatprep.subr.mxu0 0.0
    %83 = vmatpush1.msra.mxu0 0.0
    %84 = vmatprep.subr.mxu0 0.0
    %85 = vmatpush1.msra.mxu0 0.0
    %86 = vmatprep.subr.mxu0 0.0
    %87 = vmatpush1.msra.mxu0 0.0
    %88 = vmatprep.subr.mxu0 0.0
    %89 = vmatpush1.msra.mxu0 0.0
    %90 = vmatprep.subr.mxu0 0.0
    %91 = vmatpush1.msra.mxu0 0.0
    %92 = vmatprep.subr.mxu0 0.0
    %93 = vmatpush1.msra.mxu0 0.0
    %94 = vmatprep.subr.mxu0 0.0
    %95 = vmatpush1.msra.mxu0 0.0
    %96 = vmatprep.subr.mxu0 0.0
    %97 = vmatpush1.msra.mxu0 0.0
    %98 = vmatprep.subr.mxu0 0.0
    %99 = vmatpush1.msra.mxu0 0.0
    %100 = vmatprep.subr.mxu0 0.0
    %101 = vmatpush1.msra.mxu0 0.0
    %102 = vmatprep.subr.mxu0 0.0
    %103 = vmatpush1.msra.mxu0 0.0
    %104 = vmatprep.subr.mxu0 0.0
    %105 = vmatpush1.msra.mxu0 0.0
    %106 = vmatprep.subr.mxu0 0.0
    %107 = vmatpush1.msra.mxu0 0.0
    %108 = vmatprep.subr.mxu0 0.0
    %109 = vmatpush1.msra.mxu0 0.0
    %110 = vmatprep.subr.mxu0 0.0
    %111 = vmatpush1.msra.mxu0 0.0
    %112 = vmatprep.mubr.f32.mxu0 0.0
    %113 = vmatmul.mubr.f32.gmra.mrb[0].mxu0 %v43
    %v114 = vpop.f32.mrb[0].mxu0
    %v115 = vadd.f32 %v39, %v114
    %v116 = vpop.f32.mrb[0].mxu0
    %117 = vmatprep.mubr.f32.mxu0 0.0
    %118 = vmatmul.mubr.f32.gmra.mrb[0].mxu0 %v46
    %v119 = vpop.f32.mrb[0].mxu0
    %v120 = vadd.f32 %v39, %v119
    %v121 = vpop.f32.mrb[0].mxu0
    %122 = vdwg.mxu0
    %v123 = vmul.f32 %v115, %v115
    %v124 = vmul.f32 %v120, %v120
    %v125 = vmul.f32 %v123, 0.035677407
    %v126 = vmul.f32 %v124, 0.035677407
    %v127 = vadd.f32 %v125, 0.7978846
    %v128 = vadd.f32 %v126, 0.7978846
    %v129 = vmul.f32 %v115, %v127
    %v130 = vmul.f32 %v120, %v128
    %v131 = vmul.f32 %v115, 0.5
    %v132 = vmul.f32 %v120, 0.5
    %v133 = vtanh.pop %v129
    %v134 = vtanh.pop %v130
    %v135 = vadd.f32 %v133, 1.0
    %v136 = vadd.f32 %v134, 1.0
    %v137 = vmul.f32 %v131, %v135
    %v138 = vmul.f32 %v132, %v136
    %v139 = vld [vmem:[%s3] sm:$0xff]
    %v140 = vld [vmem:[%s3 + $0x8] sm:$0xff]
    %v141 = vld [vmem:[%s3 + $0x10] sm:$0xff]
    %v142 = vld [vmem:[%s3 + $0x18] sm:$0xff]
    %v143 = vld [vmem:[%s3 + $0x20] sm:$0xff]
    %v144 = vld [vmem:[%s3 + $0x28] sm:$0xff]
    %v145 = vld [vmem:[%s3 + $0x30] sm:$0xff]
    %v146 = vld [vmem:[%s3 + $0x38] sm:$0xff]
    %v147 = vld [vmem:[%s3 + $0x40] sm:$0xff]
    %v148 = vld [vmem:[%s3 + $0x48] sm:$0xff]
    %v149 = vld [vmem:[%s3 + $0x50] sm:$0xff]
    %v150 = vld [vmem:[%s3 + $0x58] sm:$0xff]
    %v151 = vld [vmem:[%s3 + $0x60] sm:$0xff]
    %v152 = vld [vmem:[%s3 + $0x68] sm:$0xff]
    %v153 = vld [vmem:[%s3 + $0x70] sm:$0xff]
    %v154 = vld [vmem:[%s3 + $0x78] sm:$0xff]
    %155 = vmatprep.subr.mxu0 0.0
    %156 = vmatpush1.msra.mxu0 %v139
    %157 = vmatprep.subr.mxu0 0.0
    %158 = vmatpush1.msra.mxu0 %v140
    %159 = vmatprep.subr.mxu0 0.0
    %160 = vmatpush1.msra.mxu0 %v141
    %161 = vmatprep.subr.mxu0 0.0
    %162 = vmatpush1.msra.mxu0 %v142
    %163 = vmatprep.subr.mxu0 0.0
    %164 = vmatpush1.msra.mxu0 %v143
    %165 = vmatprep.subr.mxu0 0.0
    %166 = vmatpush1.msra.mxu0 %v144
    %167 = vmatprep.subr.mxu0 0.0
    %168 = vmatpush1.msra.mxu0 %v145
    %169 = vmatprep.subr.mxu0 0.0
    %170 = vmatpush1.msra.mxu0 %v146
    %171 = vmatprep.subr.mxu0 0.0
    %172 = vmatpush1.msra.mxu0 %v147
    %173 = vmatprep.subr.mxu0 0.0
    %174 = vmatpush1.msra.mxu0 %v148
    %175 = vmatprep.subr.mxu0 0.0
    %176 = vmatpush1.msra.mxu0 %v149
    %177 = vmatprep.subr.mxu0 0.0
    %178 = vmatpush1.msra.mxu0 %v150
    %179 = vmatprep.subr.mxu0 0.0
    %180 = vmatpush1.msra.mxu0 %v151
    %181 = vmatprep.subr.mxu0 0.0
    %182 = vmatpush1.msra.mxu0 %v152
    %183 = vmatprep.subr.mxu0 0.0
    %184 = vmatpush1.msra.mxu0 %v153
    %185 = vmatprep.subr.mxu0 0.0
    %186 = vmatpush1.msra.mxu0 %v154
    %187 = vmatprep.subr.mxu0 0.0
    %188 = vmatpush1.msra.mxu0 0.0
    %189 = vmatprep.subr.mxu0 0.0
    %190 = vmatpush1.msra.mxu0 0.0
    %191 = vmatprep.subr.mxu0 0.0
    %192 = vmatpush1.msra.mxu0 0.0
    %193 = vmatprep.subr.mxu0 0.0
    %194 = vmatpush1.msra.mxu0 0.0
    %195 = vmatprep.subr.mxu0 0.0
    %196 = vmatpush1.msra.mxu0 0.0
    %197 = vmatprep.subr.mxu0 0.0
    %198 = vmatpush1.msra.mxu0 0.0
    %199 = vmatprep.subr.mxu0 0.0
    %200 = vmatpush1.msra.mxu0 0.0
    %201 = vmatprep.subr.mxu0 0.0
    %202 = vmatpush1.msra.mxu0 0.0
    %203 = vmatprep.subr.mxu0 0.0
    %204 = vmatpush1.msra.mxu0 0.0
    %205 = vmatprep.subr.mxu0 0.0
    %206 = vmatpush1.msra.mxu0 0.0
    %207 = vmatprep.subr.mxu0 0.0
    %208 = vmatpush1.msra.mxu0 0.0
    %209 = vmatprep.subr.mxu0 0.0
    %210 = vmatpush1.msra.mxu0 0.0
    %211 = vmatprep.subr.mxu0 0.0
    %212 = vmatpush1.msra.mxu0 0.0
    %213 = vmatprep.subr.mxu0 0.0
    %214 = vmatpush1.msra.mxu0 0.0
    %215 = vmatprep.subr.mxu0 0.0
    %216 = vmatpush1.msra.mxu0 0.0
    %217 = vmatprep.subr.mxu0 0.0
    %218 = vmatpush1.msra.mxu0 0.0
    %219 = vmatprep.mubr.f32.mxu0 0.0
    %220 = vmatmul.mubr.f32.gmra.mrb[0].mxu0 %v137
    %v221 = vpop.f32.mrb[0].mxu0
    %v222 = vadd.f32 0.0, %v221
    %v223 = vpop.f32.mrb[0].mxu0
    %224 = vmatprep.mubr.f32.mxu0 0.0
    %225 = vmatmul.mubr.f32.gmra.mrb[0].mxu0 %v138
    %v226 = vpop.f32.mrb[0].mxu0
    %v227 = vadd.f32 0.0, %v226
    %v228 = vpop.f32.mrb[0].mxu0
    %229 = vdwg.mxu0
    %v230 = vadd.f32 %v28, %v222
    %v231 = vadd.f32 %v28, %v227
    %232 = vst.msk [vmem:[#allocation2] sm:$0xff] %vm41, %v230
    %233 = vst.msk [vmem:[#allocation2 + $0x8] sm:$0xff] %vm41, %v231
    // Predicated region
    $region22: #{mlp_forward.1} parent=1 // pred_check
      _
    $region23: #{mlp_forward.1} parent=1 // pred_check_branch
      %235 = sbr.rel (0) target = $region25
    $region24: #{mlp_forward.1} parent=1 // pred_region
      %s237 = ssub.s32 256, 256
      %238 = vsyncadd [#allocation3], %s237
      %s239 = sshll.u32 [#allocation2], 4
      %s240 = int_to_ptr.vmem [resolvable:$true] %s239
      %245 = dma.vmem_to_hbm [thread:$0]  %s240, 256, %s5, [#allocation3], 128, 128, 8
    $region25: #{mlp_forward.1} parent=1 // pred_fallthru
      _
    // Predicated region
    $region26: #{mlp_forward.1} parent=1 // pred_check
      _
    $region27: #{mlp_forward.1} parent=1 // pred_check_branch
      %247 = sbr.rel (0) target = $region29
    $region28: #{mlp_forward.1} parent=1 // pred_region
      %248 = dma.done [#allocation3], 256
    $region29: #{mlp_forward.1} parent=1 // pred_fallthru
      _
    %249 = vsyncpa [#allocation3], 1

</llo_original>
